<compile_context>
chip_gen: v7x
topology: tpu7x:2x2x1
jax: 0.10.0
libtpu: 0.0.40
codegen_flags: <defaults>
</compile_context>

<pallas_src>
import jax
import jax.numpy as jnp
from jax.experimental import pallas as pl
from jax.experimental.pallas import tpu as pltpu


# ----------------------------- kernel ---------------------------------------

def affine_t_kernel(wt_ref, b_ref, xt_ref, ot_ref):
    # wt_ref: (20, 10)   b_ref: (20, 1)   xt_ref: (10, TB)   ot_ref: (20, TB)
    y = jnp.dot(wt_ref[...], xt_ref[...], preferred_element_type=jnp.float32)
    ot_ref[...] = (y + b_ref[...]).astype(ot_ref.dtype)


# ----------------------------- wrapper ---------------------------------------

def _round_up(n, m):
    return ((n + m - 1) // m) * m


def fold_params(params):
    """One-time fold of the 3 affine layers into feature-major (W_eff^T, b_eff).

    Returns:
      w_eff_t: (20, 10)  so that y^T = w_eff_t @ x^T
      b_eff:   (20, 1)   column bias for the transposed layout
    NOTE: folding reorders FP rounding vs layer-by-layer evaluation (tiny,
    documented for downstream consumers).
    """
    w1t = params["w1"].T            # (10, 20)
    w2t = params["w2"].T            # (20, 20)
    w3t = params["w3"].T            # (20, 20)
    w_eff = w1t @ w2t @ w3t                                           # (10, 20)
    b_eff = (params["b1"] @ w2t + params["b2"]) @ w3t + params["b3"]  # (20,)
    return w_eff.T.astype(jnp.float32), b_eff[:, None].astype(jnp.float32)


def data_parallel_model_forward(x, w_eff_t, b_eff, *, max_tile=8192,
                                small_batch_threshold=1024):
    """x: (B, 10). w_eff_t: (20, 10), b_eff: (20, 1) from fold_params.

    Returns (B, 20) in x.dtype (pass bf16 x for bf16 I/O; accumulate is f32).
    """
    B, F_in = x.shape
    F_out = w_eff_t.shape[0]
    io_dtype = x.dtype

    # ---- small-batch fast path: dispatch + prologue dwarf the work ----------
    if B < small_batch_threshold:
        y = jnp.dot(x.astype(jnp.float32), w_eff_t.T.astype(jnp.float32),
                    preferred_element_type=jnp.float32) + b_eff[:, 0]
        return y.astype(io_dtype)

    # ---- Pallas path: feature-major, lane-dense batch tiles -----------------
    xt = x.T                                   # (F_in, B): batch on lane axis
    wt = w_eff_t.astype(io_dtype)              # bf16 weights when I/O is bf16
    b = b_eff.astype(jnp.float32)              # bias added in f32

    TB = min(max_tile, _round_up(B, 128))
    if (B + TB - 1) // TB < 2 and B >= 256:
        # Ensure >=2 grid steps so ("parallel",) shards across v7x's 2 TCs.
        TB = min(TB, _round_up((B + 1) // 2, 128))
    grid_n = (B + TB - 1) // TB                # partial last block is masked

    itemsize = jnp.dtype(io_dtype).itemsize
    cost = pl.CostEstimate(
        flops=2 * B * F_in * F_out,
        transcendentals=0,
        bytes_accessed=B * (F_in + F_out) * itemsize
                       + F_in * F_out * itemsize + F_out * 4,
    )

    out_t = pl.pallas_call(
        affine_t_kernel,
        out_shape=jax.ShapeDtypeStruct((F_out, B), io_dtype),
        grid_spec=pltpu.PrefetchScalarGridSpec(
            num_scalar_prefetch=0,
            grid=(grid_n,),
            in_specs=[
                pl.BlockSpec((F_out, F_in), lambda i: (0, 0)),  # W_eff^T (invariant)
                pl.BlockSpec((F_out, 1), lambda i: (0, 0)),     # b_eff   (invariant)
                pl.BlockSpec((F_in, TB), lambda i: (0, i)),     # x^T batch tile
            ],
            out_specs=pl.BlockSpec((F_out, TB), lambda i: (0, i)),
        ),
        compiler_params=pltpu.CompilerParams(
            dimension_semantics=("parallel",),   # 2 TCs on v7x; harmless v5e/v6e
            vmem_limit_bytes=40 << 20,           # safe on v7x's 64 MiB physical
        ),
        cost_estimate=cost,
    )(wt, b, xt)

    return out_t.T                               # (B, F_out)


# ----------------------------- init / reference ------------------------------

def init_params(key):
    """Deterministic init mimicking nn.Linear's uniform(-1/sqrt(fan_in), ...)."""
    def linear(k, out_f, in_f):
        kw, kb = jax.random.split(k)
        bound = 1.0 / jnp.sqrt(in_f)
        w = jax.random.uniform(kw, (out_f, in_f), jnp.float32, -bound, bound)
        b = jax.random.uniform(kb, (out_f,), jnp.float32, -bound, bound)
        return w, b

    k1, k2, k3 = jax.random.split(key, 3)
    w1, b1 = linear(k1, 20, 10)
    w2, b2 = linear(k2, 20, 20)
    w3, b3 = linear(k3, 20, 20)
    return {"w1": w1, "b1": b1, "w2": w2, "b2": b2, "w3": w3, "b3": b3}


def reference_forward(x, p):
    h = x @ p["w1"].T + p["b1"]
    h = h @ p["w2"].T + p["b2"]
    h = h @ p["w3"].T + p["b3"]
    return h


# ----------------------------- demo -------------------------------------------

if __name__ == "__main__":
    key = jax.random.PRNGKey(0)
    kp, kx = jax.random.split(key)
    params = init_params(kp)

    # One-time fold (init-time, not per-call).
    w_eff_t, b_eff = fold_params(params)

    # (1) Pallas path, f32: batch large enough to exercise the tiled kernel
    #     (2 grid steps of TB=1024 lane-dense columns).
    B = 2048
    x = jax.random.normal(kx, (B, 10), jnp.float32)
    out = jax.block_until_ready(data_parallel_model_forward(x, w_eff_t, b_eff))
    ref = reference_forward(x, params)
    assert out.shape == (B, 20), out.shape
    assert jnp.allclose(out, ref, atol=5e-3, rtol=5e-3), "f32 pallas mismatch"

    # (2) Pallas path, bf16 I/O (halves HBM traffic; f32 accumulate).
    out_bf = jax.block_until_ready(
        data_parallel_model_forward(x.astype(jnp.bfloat16), w_eff_t, b_eff))
    assert out_bf.shape == (B, 20) and out_bf.dtype == jnp.bfloat16
    assert jnp.allclose(out_bf.astype(jnp.float32), ref,
                        atol=5e-2, rtol=5e-2), "bf16 pallas mismatch"

    # (3) Small-batch fast path (demo-sized B=8): plain XLA affine.
    x_small = jax.random.normal(jax.random.PRNGKey(1), (8, 10), jnp.float32)
    out_small = jax.block_until_ready(
        data_parallel_model_forward(x_small, w_eff_t, b_eff))
    ref_small = reference_forward(x_small, params)
    assert out_small.shape == (8, 20)
    assert jnp.allclose(out_small, ref_small, atol=1e-4, rtol=1e-4), \
        "small-batch mismatch"

    print("KERNEL_OK")
</pallas_src>

<mosaic_0001>
module attributes {stable_mosaic.version = 11 : i64} {
  func.func @affine_t_kernel(%arg0: i32, %arg1: memref<20x10xf32, #tpu.memory_space<vmem>>, %arg2: memref<20x1xf32, #tpu.memory_space<vmem>>, %arg3: memref<10x1024xf32, #tpu.memory_space<vmem>>, %arg4: memref<20x1024xf32, #tpu.memory_space<vmem>>) attributes {dimension_semantics = [#tpu.dimension_semantics<parallel>], iteration_bounds = array<i64: 2>, scalar_prefetch = 0 : i64, scratch_operands = 0 : i64, tpu.core_type = #tpu.core_type<tc>, window_params = [{pipeline_mode = #tpu.pipeline_mode<synchronous>, transform_indices = @transform_0, window_bounds = array<i64: 20, 10>}, {pipeline_mode = #tpu.pipeline_mode<synchronous>, transform_indices = @transform_1, window_bounds = array<i64: 20, 1>}, {transform_indices = @transform_2, window_bounds = array<i64: 10, 1024>}, {transform_indices = @transform_3, window_bounds = array<i64: 20, 1024>}]} {
    %c0 = arith.constant 0 : index
    %c0_0 = arith.constant 0 : index
    %0 = vector.load %arg1[%c0, %c0_0] : memref<20x10xf32, #tpu.memory_space<vmem>>, vector<20x10xf32>
    %c0_1 = arith.constant 0 : index
    %c0_2 = arith.constant 0 : index
    %1 = vector.load %arg3[%c0_1, %c0_2] : memref<10x1024xf32, #tpu.memory_space<vmem>>, vector<10x1024xf32>
    %cst = arith.constant dense<0.000000e+00> : vector<20x1024xf32>
    %2 = tpu.matmul %0, %1, %cst {dimension_numbers = #tpu.dot_dimension_numbers<[1], [0], [0], [1], [0, 0, 1, 1], [], []>} : vector<20x10xf32>, vector<10x1024xf32>, vector<20x1024xf32> -> vector<20x1024xf32>
    %c0_3 = arith.constant 0 : index
    %c0_4 = arith.constant 0 : index
    %3 = vector.load %arg2[%c0_3, %c0_4] : memref<20x1xf32, #tpu.memory_space<vmem>>, vector<20x1xf32>
    %4 = vector.broadcast %3 : vector<20x1xf32> to vector<20x1024xf32>
    %5 = arith.addf %2, %4 : vector<20x1024xf32>
    %c0_5 = arith.constant 0 : index
    %c0_6 = arith.constant 0 : index
    %6 = vector.load %arg4[%c0_5, %c0_6] : memref<20x1024xf32, #tpu.memory_space<vmem>>, vector<20x1024xf32>
    tpu.vector_store %arg4[%c0_5, %c0_6], %5 {strides = array<i32>} : memref<20x1024xf32, #tpu.memory_space<vmem>>, vector<20x1024xf32>,
    return
  }
  func.func @transform_0(%arg0: i32) -> (i32, i32) {
    %c0_i32 = arith.constant 0 : i32
    %c0_i32_0 = arith.constant 0 : i32
    %c0_i32_1 = arith.constant 0 : i32
    return %c0_i32, %c0_i32_0 : i32, i32
  }
  func.func @transform_1(%arg0: i32) -> (i32, i32) {
    %c0_i32 = arith.constant 0 : i32
    %c0_i32_0 = arith.constant 0 : i32
    %c0_i32_1 = arith.constant 0 : i32
    return %c0_i32, %c0_i32_0 : i32, i32
  }
  func.func @transform_2(%arg0: i32) -> (i32, i32) {
    %c0_i32 = arith.constant 0 : i32
    %c0_i32_0 = arith.constant 0 : i32
    return %c0_i32, %arg0 : i32, i32
  }
  func.func @transform_3(%arg0: i32) -> (i32, i32) {
    %c0_i32 = arith.constant 0 : i32
    %c0_i32_0 = arith.constant 0 : i32
    return %c0_i32, %arg0 : i32, i32
  }
}

</mosaic_0001>

<llo_original>
// kernel: tpu_custom_call.1
$region0: #{tpu_custom_call.1}
  #allocation0 [shape = 'u32[]', space=smem, size = 0x4, offset = 0x4, fixed_abs, tag = 'smem constant byte address 0x4 - core index']
  #allocation1 [shape = 'u32[144,128]{1,0:T(1,128)}', space=vmem, size = 0x12000, scoped, tag = 'internal scratch']
  %s0 = inlined_call_operand.vmem [shape: f32[20,10], index: 0, kind: input, shape index: {}]
  %s1 = inlined_call_operand.vmem [shape: f32[20,1], index: 1, kind: input, shape index: {}]
  %s2 = inlined_call_operand.hbm [shape: f32[10,2048], index: 2, kind: input, shape index: {}]
  %s3 = inlined_call_operand.hbm [shape: f32[20,2048], index: 3, kind: output, shape index: {}]
  %s4 = sld [smem:[#allocation0]]
  $region49: #{tpu_custom_call.1} parent=0
    _
  %s6 = ssub.s32 1, %s4
  %s7 = scalar_select 0, %s6, %s4
  $region1: #{tpu_custom_call.1} parent=0
    #allocation2 [shape = 'u8[131072]{0}', space=vmem, size = 0x20000, scoped, tag = 'input window, operand 2']
    #allocation3 [shape = 's32[2]{0}', space=sflag, size = 0x8, scoped, tag = 'scoped memory for tpu_custom_call.1']
    #allocation4 [shape = 's32[2]{0}', space=sflag, size = 0x8, scoped, tag = 'scoped memory for tpu_custom_call.1']
    #allocation5 [shape = 'u8[196608]{0}', space=vmem, size = 0x30000, scoped, tag = 'output window, operand 0']
    %8 = vsyncpa [#allocation3], 0
    %s9 = scalar_lea.sflag [#allocation3], 1
    %10 = vsyncpa %s9, 0
    %11 = vsyncpa [#allocation4], 0
    %s12 = scalar_lea.sflag [#allocation4], 1
    %13 = vsyncpa %s12, 0
    loop: start=0, step=1, limit=4
    $region2: #{tpu_custom_call.1} parent=1 // loop_pre_header
      _
    $region3: #{tpu_custom_call.1} parent=1 // loop_header
      %s15 = sphi 0, %s19
      %p16 = scmp.ge.s32.totalorder %s15, 4
      %s23 = sphi 0, %s23
      %s25 = sphi 0, %s23
      %s26 = sphi 0, %s25
      %s40 = sphi 0, %s26
      %s44 = sphi 0, %s44
      %s46 = sphi 0, %s44
      %s47 = sphi 0, %s46
      %s61 = sphi 0, %s47
      %s67 = sphi 0, %s69
      %s70 = sphi 0, %s67
      %s71 = sphi 0, %s70
      %s87 = sphi 0, %s71
      %s93 = sphi 0, %s95
      %s96 = sphi 0, %s93
      %s97 = sphi 0, %s96
      %s113 = sphi 0, %s97
    $region4: #{tpu_custom_call.1} parent=1 // loop_header_branch
      %18 = sbr.rel (%p16) target = $region8
    $region5: #{tpu_custom_call.1} parent=1 // loop_body
      %s20 = ssub.s32 %s15, 1
      %s21 = ssub.s32 %s15, 2
      %s22 = sadd.s32 %s15, 1
      %s24 = sadd.s32 %s23, 1
      %p27 = scmp.eq.s32.totalorder %s15, 1
      %p28 = scmp.ne.s32.totalorder %s23, %s25
      %p29 = scmp.eq.s32.totalorder %s15, 0
      %p30 = por %p28, %p29
      %p31 = scmp.ne.s32.totalorder %s23, %s25
      %p32 = scmp.eq.s32.totalorder %s20, 1
      %p33 = por %p31, %p32
      %p34 = scmp.ne.s32.totalorder %s25, %s26
      %p35 = scmp.eq.s32.totalorder %s20, 0
      %p36 = por %p34, %p35
      %p37 = scmp.ne.s32.totalorder %s25, %s26
      %p38 = scmp.eq.s32.totalorder %s21, 1
      %p39 = por %p37, %p38
      %p41 = scmp.ne.s32.totalorder %s26, %s40
      %p42 = scmp.eq.s32.totalorder %s21, 0
      %p43 = por %p41, %p42
      %s45 = sadd.s32 %s44, 1
      %p48 = scmp.eq.s32.totalorder %s15, 1
      %p49 = scmp.ne.s32.totalorder %s44, %s46
      %p50 = scmp.eq.s32.totalorder %s15, 0
      %p51 = por %p49, %p50
      %p52 = scmp.ne.s32.totalorder %s44, %s46
      %p53 = scmp.eq.s32.totalorder %s20, 1
      %p54 = por %p52, %p53
      %p55 = scmp.ne.s32.totalorder %s46, %s47
      %p56 = scmp.eq.s32.totalorder %s20, 0
      %p57 = por %p55, %p56
      %p58 = scmp.ne.s32.totalorder %s46, %s47
      %p59 = scmp.eq.s32.totalorder %s21, 1
      %p60 = por %p58, %p59
      %p62 = scmp.ne.s32.totalorder %s47, %s61
      %p63 = scmp.eq.s32.totalorder %s21, 0
      %p64 = por %p62, %p63
      %s65 = ssub.s32 %s15, %s22
      %p66 = scmp.eq.s32.totalorder %s65, 0
      %s68 = sadd.s32 %s67, 1
      %s69 = scalar_select %p66, %s67, %s68
      %p72 = pneg %p66
      %p73 = scmp.eq.s32.totalorder %s15, 1
      %p74 = por %p72, %p73
      %p75 = scmp.ne.s32.totalorder %s67, %s70
      %p76 = scmp.eq.s32.totalorder %s15, 0
      %p77 = por %p75, %p76
      %p78 = scmp.ne.s32.totalorder %s67, %s70
      %p79 = scmp.eq.s32.totalorder %s20, 1
      %p80 = por %p78, %p79
      %p81 = scmp.ne.s32.totalorder %s70, %s71
      %p82 = scmp.eq.s32.totalorder %s20, 0
      %p83 = por %p81, %p82
      %p84 = scmp.ne.s32.totalorder %s70, %s71
      %p85 = scmp.eq.s32.totalorder %s21, 1
      %p86 = por %p84, %p85
      %p88 = scmp.ne.s32.totalorder %s71, %s87
      %p89 = scmp.eq.s32.totalorder %s21, 0
      %p90 = por %p88, %p89
      %s91 = ssub.s32 %s15, %s22
      %p92 = scmp.eq.s32.totalorder %s91, 0
      %s94 = sadd.s32 %s93, 1
      %s95 = scalar_select %p92, %s93, %s94
      %p98 = pneg %p92
      %p99 = scmp.eq.s32.totalorder %s15, 1
      %p100 = por %p98, %p99
      %p101 = scmp.ne.s32.totalorder %s93, %s96
      %p102 = scmp.eq.s32.totalorder %s15, 0
      %p103 = por %p101, %p102
      %p104 = scmp.ne.s32.totalorder %s93, %s96
      %p105 = scmp.eq.s32.totalorder %s20, 1
      %p106 = por %p104, %p105
      %p107 = scmp.ne.s32.totalorder %s96, %s97
      %p108 = scmp.eq.s32.totalorder %s20, 0
      %p109 = por %p107, %p108
      %p110 = scmp.ne.s32.totalorder %s96, %s97
      %p111 = scmp.eq.s32.totalorder %s21, 1
      %p112 = por %p110, %p111
      %p114 = scmp.ne.s32.totalorder %s97, %s113
      %p115 = scmp.eq.s32.totalorder %s21, 0
      %p116 = por %p114, %p115
      %p117 = scmp.le.s32.totalorder 1, %s15
      %p118 = scmp.lt.s32.totalorder %s15, 3
      %p119 = pnand %p117, %p118
      %p120 = pneg %p119
      // Predicated region
      $region9: #{tpu_custom_call.1} parent=5 // pred_check
        _
      $region10: #{tpu_custom_call.1} parent=5 // pred_check_branch
        %122 = sbr.rel (%p119) target = $region12
      $region11: #{tpu_custom_call.1} parent=5 // pred_region
        %s123 = ssub.s32 %s15, 1
        // Predicated region
        $region13: #{tpu_custom_call.1} parent=11 // pred_check
          %p124 = pneg %p36
        $region14: #{tpu_custom_call.1} parent=11 // pred_check_branch
          %126 = sbr.rel (%p124) target = $region16
        $region15: #{tpu_custom_call.1} parent=11 // pred_region
          _
        $region16: #{tpu_custom_call.1} parent=11 // pred_fallthru
          _
        // Predicated region
        $region17: #{tpu_custom_call.1} parent=11 // pred_check
          %p127 = pneg %p57
        $region18: #{tpu_custom_call.1} parent=11 // pred_check_branch
          %129 = sbr.rel (%p127) target = $region20
        $region19: #{tpu_custom_call.1} parent=11 // pred_region
          _
        $region20: #{tpu_custom_call.1} parent=11 // pred_fallthru
          _
      $region12: #{tpu_custom_call.1} parent=5 // pred_fallthru
        _
      %p130 = scmp.lt.s32.totalorder %s15, 2
      // Predicated region
      $region21: #{tpu_custom_call.1} parent=5 // pred_check
        %p131 = pneg %p130
      $region22: #{tpu_custom_call.1} parent=5 // pred_check_branch
        %133 = sbr.rel (%p131) target = $region24
      $region23: #{tpu_custom_call.1} parent=5 // pred_region
        // Predicated region
        $region25: #{tpu_custom_call.1} parent=23 // pred_check
          %p134 = pneg %p77
        $region26: #{tpu_custom_call.1} parent=23 // pred_check_branch
          %136 = sbr.rel (%p134) target = $region28
        $region27: #{tpu_custom_call.1} parent=23 // pred_region
          %s137 = sand.u32 %s67, 1
          %s138 = scalar_lea.sflag [#allocation3], %s137
          %s139 = sand.u32 %s67, 1
          %s140 = smul.addr %s139, 128
          %s141 = scalar_lea.vmem [#allocation2], %s140
          %s142 = smul.u32 8, %s15
          %s144 = ssub.s32 2048, 2048
          %145 = vsyncadd %s138, %s144
          %s146 = smul.addr %s142, 128
          %s147 = scalar_lea.hbm %s2, %s146
          %s148 = sshll.u32 %s141, 4
          %s149 = int_to_ptr.vmem [resolvable:$true] %s148
          %154 = dma.hbm_to_vmem [thread:$0]  %s147, 2048, %s149, %s138, 2048, 1024, 64
        $region28: #{tpu_custom_call.1} parent=23 // pred_fallthru
          _
      $region24: #{tpu_custom_call.1} parent=5 // pred_fallthru
        _
      %p155 = scmp.le.s32.totalorder 1, %s15
      %p156 = scmp.lt.s32.totalorder %s15, 3
      %p157 = pnand %p155, %p156
      %p158 = pneg %p157
      // Predicated region
      $region29: #{tpu_custom_call.1} parent=5 // pred_check
        _
      $region30: #{tpu_custom_call.1} parent=5 // pred_check_branch
        %160 = sbr.rel (%p157) target = $region32
      $region31: #{tpu_custom_call.1} parent=5 // pred_region
        %s161 = ssub.s32 %s15, 1
        %s162 = sand.u32 %s70, 1
        %s163 = scalar_lea.sflag [#allocation3], %s162
        %s164 = sand.u32 %s70, 1
        %s165 = smul.addr %s164, 128
        %s166 = scalar_lea.vmem [#allocation2], %s165
        // Predicated region
        $region33: #{tpu_custom_call.1} parent=31 // pred_check
          %p167 = pneg %p83
        $region34: #{tpu_custom_call.1} parent=31 // pred_check_branch
          %169 = sbr.rel (%p167) target = $region36
        $region35: #{tpu_custom_call.1} parent=31 // pred_region
          %170 = dma.done %s163, 2048
        $region36: #{tpu_custom_call.1} parent=31 // pred_fallthru
          _
        %p171 = pneg %p36
        %p172 = pneg %p33
        %p173 = pneg %p57
        %p174 = pneg %p54
        %s175 = sand.u32 %s70, 1
        %s176 = scalar_lea.sflag [#allocation3], %s175
        %s177 = sand.u32 %s70, 1
        %s178 = smul.addr %s177, 128
        %s179 = scalar_lea.vmem [#allocation2], %s178
        %p180 = pneg %p83
        %p181 = pneg %p80
        %p182 = pneg %p109
        %p183 = pneg %p106
        %s184 = sand.u32 %s96, 1
        %s185 = scalar_lea.sflag [#allocation4], %s184
        %s186 = sand.u32 %s96, 1
        %s187 = smul.addr %s186, 192
        %s188 = scalar_lea.vmem [#allocation5], %s187
        %s189 = smul.u32 8, %s20
        %s190 = smul.u32 8, %s20
        %v191 = vld [vmem:[%s0] sm:$0xff]
        %v192 = vld [vmem:[%s0 + $0x8] sm:$0xff]
        %v193 = vld [vmem:[%s0 + $0x10] sm:$0xf]
        %v194 = vld [vmem:[%s166] sm:$0xff]
        %v195 = vld [vmem:[%s166 + $0x8] sm:$0xff]
        %v196 = vld [vmem:[%s166 + $0x10] sm:$0xff]
        %v197 = vld [vmem:[%s166 + $0x18] sm:$0xff]
        %v198 = vld [vmem:[%s166 + $0x20] sm:$0xff]
        %v199 = vld [vmem:[%s166 + $0x28] sm:$0xff]
        %v200 = vld [vmem:[%s166 + $0x30] sm:$0xff]
        %v201 = vld [vmem:[%s166 + $0x38] sm:$0xff]
        %v202 = vld [vmem:[%s166 + $0x40] sm:$0x3]
        %v203 = vld [vmem:[%s166 + $0x48] sm:$0x3]
        %v204 = vld [vmem:[%s166 + $0x50] sm:$0x3]
        %v205 = vld [vmem:[%s166 + $0x58] sm:$0x3]
        %v206 = vld [vmem:[%s166 + $0x60] sm:$0x3]
        %v207 = vld [vmem:[%s166 + $0x68] sm:$0x3]
        %v208 = vld [vmem:[%s166 + $0x70] sm:$0x3]
        %v209 = vld [vmem:[%s166 + $0x78] sm:$0x3]
        %v210 = vld [vmem:[%s1] sm:$0xff]
        %v211 = vld [vmem:[%s1 + $0x8] sm:$0xff]
        %v212 = vld [vmem:[%s1 + $0x10] sm:$0xf]
        %214 = vset.pattern.permute.xlu0 0
        %215 = vperm.xlu0 %214, %v210
        %v216 = vpop.permute.xlu0 %215
        %219 = vset.pattern.permute.xlu0 0
        %220 = vperm.xlu0 %219, %v211
        %v221 = vpop.permute.xlu0 %220
        %224 = vset.pattern.permute.xlu0 0
        %225 = vperm.xlu0 %224, %v212
        %v226 = vpop.permute.xlu0 %225
        %vm228 = vcmask 80896
        %v230 = vsel %vm228, %v191, 0
        %v233 = vsel %vm228, %v192, 0
        %v236 = vsel %vm228, %v193, 0
        %vm238 = vcmask 1041408
        %v240 = vsel %vm238, %v202, 0
        %v243 = vsel %vm238, %v203, 0
        %v246 = vsel %vm238, %v204, 0
        %v249 = vsel %vm238, %v205, 0
        %v252 = vsel %vm238, %v206, 0
        %v255 = vsel %vm238, %v207, 0
        %v258 = vsel %vm238, %v208, 0
        %v261 = vsel %vm238, %v209, 0
        %263 = vmatprep.subr.mxu0 %v195
        %264 = vmatpush1.msra.mxu0 %v194
        %265 = vmatprep.subr.mxu0 %v243
        %266 = vmatpush1.msra.mxu0 %v240
        %267 = vmatprep.subr.mxu0 0.0
        %268 = vmatpush1.msra.mxu0 0.0
        %269 = vmatprep.subr.mxu0 0.0
        %270 = vmatpush1.msra.mxu0 0.0
        %271 = vmatprep.subr.mxu0 0.0
        %272 = vmatpush1.msra.mxu0 0.0
        %273 = vmatprep.subr.mxu0 0.0
        %274 = vmatpush1.msra.mxu0 0.0
        %275 = vmatprep.subr.mxu0 0.0
        %276 = vmatpush1.msra.mxu0 0.0
        %277 = vmatprep.subr.mxu0 0.0
        %278 = vmatpush1.msra.mxu0 0.0
        %279 = vmatprep.subr.mxu0 0.0
        %280 = vmatpush1.msra.mxu0 0.0
        %281 = vmatprep.subr.mxu0 0.0
        %282 = vmatpush1.msra.mxu0 0.0
        %283 = vmatprep.subr.mxu0 0.0
        %284 = vmatpush1.msra.mxu0 0.0
        %285 = vmatprep.subr.mxu0 0.0
        %286 = vmatpush1.msra.mxu0 0.0
        %287 = vmatprep.subr.mxu0 0.0
        %288 = vmatpush1.msra.mxu0 0.0
        %289 = vmatprep.subr.mxu0 0.0
        %290 = vmatpush1.msra.mxu0 0.0
        %291 = vmatprep.subr.mxu0 0.0
        %292 = vmatpush1.msra.mxu0 0.0
        %293 = vmatprep.subr.mxu0 0.0
        %294 = vmatpush1.msra.mxu0 0.0
        %295 = vmatprep.subr.mxu0 0.0
        %296 = vmatpush1.msra.mxu0 0.0
        %297 = vmatprep.subr.mxu0 0.0
        %298 = vmatpush1.msra.mxu0 0.0
        %299 = vmatprep.subr.mxu0 0.0
        %300 = vmatpush1.msra.mxu0 0.0
        %301 = vmatprep.subr.mxu0 0.0
        %302 = vmatpush1.msra.mxu0 0.0
        %303 = vmatprep.subr.mxu0 0.0
        %304 = vmatpush1.msra.mxu0 0.0
        %305 = vmatprep.subr.mxu0 0.0
        %306 = vmatpush1.msra.mxu0 0.0
        %307 = vmatprep.subr.mxu0 0.0
        %308 = vmatpush1.msra.mxu0 0.0
        %309 = vmatprep.subr.mxu0 0.0
        %310 = vmatpush1.msra.mxu0 0.0
        %311 = vmatprep.subr.mxu0 0.0
        %312 = vmatpush1.msra.mxu0 0.0
        %313 = vmatprep.subr.mxu0 0.0
        %314 = vmatpush1.msra.mxu0 0.0
        %315 = vmatprep.subr.mxu0 0.0
        %316 = vmatpush1.msra.mxu0 0.0
        %317 = vmatprep.subr.mxu0 0.0
        %318 = vmatpush1.msra.mxu0 0.0
        %319 = vmatprep.subr.mxu0 0.0
        %320 = vmatpush1.msra.mxu0 0.0
        %321 = vmatprep.subr.mxu0 0.0
        %322 = vmatpush1.msra.mxu0 0.0
        %323 = vmatprep.subr.mxu0 0.0
        %324 = vmatpush1.msra.mxu0 0.0
        %325 = vmatprep.subr.mxu0 0.0
        %326 = vmatpush1.msra.mxu0 0.0
        %327 = vmatprep.mubr.f32.mxu0 0.0
        %328 = vmatmul.mubr.f32.gmra.mrb[0].mxu0 %v230
        %v329 = vpop.f32.mrb[0].mxu0
        %v330 = vadd.f32 %v216, %v329
        %v331 = vpop.f32.mrb[0].mxu0
        %v332 = vadd.f32 %v216, %v331
        %333 = vmatprep.mubr.f32.mxu0 0.0
        %334 = vmatmul.mubr.f32.gmra.mrb[0].mxu0 %v233
        %v335 = vpop.f32.mrb[0].mxu0
        %v336 = vadd.f32 %v221, %v335
        %v337 = vpop.f32.mrb[0].mxu0
        %v338 = vadd.f32 %v221, %v337
        %339 = vmatprep.mubr.f32.mxu0 0.0
        %340 = vmatmul.mubr.f32.gmra.mrb[0].mxu0 %v236
        %v341 = vpop.f32.mrb[0].mxu0
        %v342 = vadd.f32 %v226, %v341
        %v343 = vpop.f32.mrb[0].mxu0
        %v344 = vadd.f32 %v226, %v343
        %345 = vdwg.mxu0
        %346 = vmatprep.subr.mxu0 %v197
        %347 = vmatpush1.msra.mxu0 %v196
        %348 = vmatprep.subr.mxu0 %v249
        %349 = vmatpush1.msra.mxu0 %v246
        %350 = vmatprep.subr.mxu0 0.0
        %351 = vmatpush1.msra.mxu0 0.0
        %352 = vmatprep.subr.mxu0 0.0
        %353 = vmatpush1.msra.mxu0 0.0
        %354 = vmatprep.subr.mxu0 0.0
        %355 = vmatpush1.msra.mxu0 0.0
        %356 = vmatprep.subr.mxu0 0.0
        %357 = vmatpush1.msra.mxu0 0.0
        %358 = vmatprep.subr.mxu0 0.0
        %359 = vmatpush1.msra.mxu0 0.0
        %360 = vmatprep.subr.mxu0 0.0
        %361 = vmatpush1.msra.mxu0 0.0
        %362 = vmatprep.subr.mxu0 0.0
        %363 = vmatpush1.msra.mxu0 0.0
        %364 = vmatprep.subr.mxu0 0.0
        %365 = vmatpush1.msra.mxu0 0.0
        %366 = vmatprep.subr.mxu0 0.0
        %367 = vmatpush1.msra.mxu0 0.0
        %368 = vmatprep.subr.mxu0 0.0
        %369 = vmatpush1.msra.mxu0 0.0
        %370 = vmatprep.subr.mxu0 0.0
        %371 = vmatpush1.msra.mxu0 0.0
        %372 = vmatprep.subr.mxu0 0.0
        %373 = vmatpush1.msra.mxu0 0.0
        %374 = vmatprep.subr.mxu0 0.0
        %375 = vmatpush1.msra.mxu0 0.0
        %376 = vmatprep.subr.mxu0 0.0
        %377 = vmatpush1.msra.mxu0 0.0
        %378 = vmatprep.subr.mxu0 0.0
        %379 = vmatpush1.msra.mxu0 0.0
        %380 = vmatprep.subr.mxu0 0.0
        %381 = vmatpush1.msra.mxu0 0.0
        %382 = vmatprep.subr.mxu0 0.0
        %383 = vmatpush1.msra.mxu0 0.0
        %384 = vmatprep.subr.mxu0 0.0
        %385 = vmatpush1.msra.mxu0 0.0
        %386 = vmatprep.subr.mxu0 0.0
        %387 = vmatpush1.msra.mxu0 0.0
        %388 = vmatprep.subr.mxu0 0.0
        %389 = vmatpush1.msra.mxu0 0.0
        %390 = vmatprep.subr.mxu0 0.0
        %391 = vmatpush1.msra.mxu0 0.0
        %392 = vmatprep.subr.mxu0 0.0
        %393 = vmatpush1.msra.mxu0 0.0
        %394 = vmatprep.subr.mxu0 0.0
        %395 = vmatpush1.msra.mxu0 0.0
        %396 = vmatprep.subr.mxu0 0.0
        %397 = vmatpush1.msra.mxu0 0.0
        %398 = vmatprep.subr.mxu0 0.0
        %399 = vmatpush1.msra.mxu0 0.0
        %400 = vmatprep.subr.mxu0 0.0
        %401 = vmatpush1.msra.mxu0 0.0
        %402 = vmatprep.subr.mxu0 0.0
        %403 = vmatpush1.msra.mxu0 0.0
        %404 = vmatprep.subr.mxu0 0.0
        %405 = vmatpush1.msra.mxu0 0.0
        %406 = vmatprep.subr.mxu0 0.0
        %407 = vmatpush1.msra.mxu0 0.0
        %408 = vmatprep.subr.mxu0 0.0
        %409 = vmatpush1.msra.mxu0 0.0
        %410 = vmatprep.mubr.f32.mxu0 0.0
        %411 = vmatmul.mubr.f32.gmra.mrb[0].mxu0 %v230
        %v412 = vpop.f32.mrb[0].mxu0
        %v413 = vadd.f32 %v216, %v412
        %v414 = vpop.f32.mrb[0].mxu0
        %v415 = vadd.f32 %v216, %v414
        %416 = vmatprep.mubr.f32.mxu0 0.0
        %417 = vmatmul.mubr.f32.gmra.mrb[0].mxu0 %v233
        %v418 = vpop.f32.mrb[0].mxu0
        %v419 = vadd.f32 %v221, %v418
        %v420 = vpop.f32.mrb[0].mxu0
        %v421 = vadd.f32 %v221, %v420
        %422 = vmatprep.mubr.f32.mxu0 0.0
        %423 = vmatmul.mubr.f32.gmra.mrb[0].mxu0 %v236
        %v424 = vpop.f32.mrb[0].mxu0
        %v425 = vadd.f32 %v226, %v424
        %v426 = vpop.f32.mrb[0].mxu0
        %v427 = vadd.f32 %v226, %v426
        %428 = vdwg.mxu0
        %429 = vmatprep.subr.mxu0 %v199
        %430 = vmatpush1.msra.mxu0 %v198
        %431 = vmatprep.subr.mxu0 %v255
        %432 = vmatpush1.msra.mxu0 %v252
        %433 = vmatprep.subr.mxu0 0.0
        %434 = vmatpush1.msra.mxu0 0.0
        %435 = vmatprep.subr.mxu0 0.0
        %436 = vmatpush1.msra.mxu0 0.0
        %437 = vmatprep.subr.mxu0 0.0
        %438 = vmatpush1.msra.mxu0 0.0
        %439 = vmatprep.subr.mxu0 0.0
        %440 = vmatpush1.msra.mxu0 0.0
        %441 = vmatprep.subr.mxu0 0.0
        %442 = vmatpush1.msra.mxu0 0.0
        %443 = vmatprep.subr.mxu0 0.0
        %444 = vmatpush1.msra.mxu0 0.0
        %445 = vmatprep.subr.mxu0 0.0
        %446 = vmatpush1.msra.mxu0 0.0
        %447 = vmatprep.subr.mxu0 0.0
        %448 = vmatpush1.msra.mxu0 0.0
        %449 = vmatprep.subr.mxu0 0.0
        %450 = vmatpush1.msra.mxu0 0.0
        %451 = vmatprep.subr.mxu0 0.0
        %452 = vmatpush1.msra.mxu0 0.0
        %453 = vmatprep.subr.mxu0 0.0
        %454 = vmatpush1.msra.mxu0 0.0
        %455 = vmatprep.subr.mxu0 0.0
        %456 = vmatpush1.msra.mxu0 0.0
        %457 = vmatprep.subr.mxu0 0.0
        %458 = vmatpush1.msra.mxu0 0.0
        %459 = vmatprep.subr.mxu0 0.0
        %460 = vmatpush1.msra.mxu0 0.0
        %461 = vmatprep.subr.mxu0 0.0
        %462 = vmatpush1.msra.mxu0 0.0
        %463 = vmatprep.subr.mxu0 0.0
        %464 = vmatpush1.msra.mxu0 0.0
        %465 = vmatprep.subr.mxu0 0.0
        %466 = vmatpush1.msra.mxu0 0.0
        %467 = vmatprep.subr.mxu0 0.0
        %468 = vmatpush1.msra.mxu0 0.0
        %469 = vmatprep.subr.mxu0 0.0
        %470 = vmatpush1.msra.mxu0 0.0
        %471 = vmatprep.subr.mxu0 0.0
        %472 = vmatpush1.msra.mxu0 0.0
        %473 = vmatprep.subr.mxu0 0.0
        %474 = vmatpush1.msra.mxu0 0.0
        %475 = vmatprep.subr.mxu0 0.0
        %476 = vmatpush1.msra.mxu0 0.0
        %477 = vmatprep.subr.mxu0 0.0
        %478 = vmatpush1.msra.mxu0 0.0
        %479 = vmatprep.subr.mxu0 0.0
        %480 = vmatpush1.msra.mxu0 0.0
        %481 = vmatprep.subr.mxu0 0.0
        %482 = vmatpush1.msra.mxu0 0.0
        %483 = vmatprep.subr.mxu0 0.0
        %484 = vmatpush1.msra.mxu0 0.0
        %485 = vmatprep.subr.mxu0 0.0
        %486 = vmatpush1.msra.mxu0 0.0
        %487 = vmatprep.subr.mxu0 0.0
        %488 = vmatpush1.msra.mxu0 0.0
        %489 = vmatprep.subr.mxu0 0.0
        %490 = vmatpush1.msra.mxu0 0.0
        %491 = vmatprep.subr.mxu0 0.0
        %492 = vmatpush1.msra.mxu0 0.0
        %493 = vmatprep.mubr.f32.mxu0 0.0
        %494 = vmatmul.mubr.f32.gmra.mrb[0].mxu0 %v230
        %v495 = vpop.f32.mrb[0].mxu0
        %v496 = vadd.f32 %v216, %v495
        %v497 = vpop.f32.mrb[0].mxu0
        %v498 = vadd.f32 %v216, %v497
        %499 = vmatprep.mubr.f32.mxu0 0.0
        %500 = vmatmul.mubr.f32.gmra.mrb[0].mxu0 %v233
        %v501 = vpop.f32.mrb[0].mxu0
        %v502 = vadd.f32 %v221, %v501
        %v503 = vpop.f32.mrb[0].mxu0
        %v504 = vadd.f32 %v221, %v503
        %505 = vmatprep.mubr.f32.mxu0 0.0
        %506 = vmatmul.mubr.f32.gmra.mrb[0].mxu0 %v236
        %v507 = vpop.f32.mrb[0].mxu0
        %v508 = vadd.f32 %v226, %v507
        %v509 = vpop.f32.mrb[0].mxu0
        %v510 = vadd.f32 %v226, %v509
        %511 = vdwg.mxu0
        %512 = vmatprep.subr.mxu0 %v201
        %513 = vmatpush1.msra.mxu0 %v200
        %514 = vmatprep.subr.mxu0 %v261
        %515 = vmatpush1.msra.mxu0 %v258
        %516 = vmatprep.subr.mxu0 0.0
        %517 = vmatpush1.msra.mxu0 0.0
        %518 = vmatprep.subr.mxu0 0.0
        %519 = vmatpush1.msra.mxu0 0.0
        %520 = vmatprep.subr.mxu0 0.0
        %521 = vmatpush1.msra.mxu0 0.0
        %522 = vmatprep.subr.mxu0 0.0
        %523 = vmatpush1.msra.mxu0 0.0
        %524 = vmatprep.subr.mxu0 0.0
        %525 = vmatpush1.msra.mxu0 0.0
        %526 = vmatprep.subr.mxu0 0.0
        %527 = vmatpush1.msra.mxu0 0.0
        %528 = vmatprep.subr.mxu0 0.0
        %529 = vmatpush1.msra.mxu0 0.0
        %530 = vmatprep.subr.mxu0 0.0
        %531 = vmatpush1.msra.mxu0 0.0
        %532 = vmatprep.subr.mxu0 0.0
        %533 = vmatpush1.msra.mxu0 0.0
        %534 = vmatprep.subr.mxu0 0.0
        %535 = vmatpush1.msra.mxu0 0.0
        %536 = vmatprep.subr.mxu0 0.0
        %537 = vmatpush1.msra.mxu0 0.0
        %538 = vmatprep.subr.mxu0 0.0
        %539 = vmatpush1.msra.mxu0 0.0
        %540 = vmatprep.subr.mxu0 0.0
        %541 = vmatpush1.msra.mxu0 0.0
        %542 = vmatprep.subr.mxu0 0.0
        %543 = vmatpush1.msra.mxu0 0.0
        %544 = vmatprep.subr.mxu0 0.0
        %545 = vmatpush1.msra.mxu0 0.0
        %546 = vmatprep.subr.mxu0 0.0
        %547 = vmatpush1.msra.mxu0 0.0
        %548 = vmatprep.subr.mxu0 0.0
        %549 = vmatpush1.msra.mxu0 0.0
        %550 = vmatprep.subr.mxu0 0.0
        %551 = vmatpush1.msra.mxu0 0.0
        %552 = vmatprep.subr.mxu0 0.0
        %553 = vmatpush1.msra.mxu0 0.0
        %554 = vmatprep.subr.mxu0 0.0
        %555 = vmatpush1.msra.mxu0 0.0
        %556 = vmatprep.subr.mxu0 0.0
        %557 = vmatpush1.msra.mxu0 0.0
        %558 = vmatprep.subr.mxu0 0.0
        %559 = vmatpush1.msra.mxu0 0.0
        %560 = vmatprep.subr.mxu0 0.0
        %561 = vmatpush1.msra.mxu0 0.0
        %562 = vmatprep.subr.mxu0 0.0
        %563 = vmatpush1.msra.mxu0 0.0
        %564 = vmatprep.subr.mxu0 0.0
        %565 = vmatpush1.msra.mxu0 0.0
        %566 = vmatprep.subr.mxu0 0.0
        %567 = vmatpush1.msra.mxu0 0.0
        %568 = vmatprep.subr.mxu0 0.0
        %569 = vmatpush1.msra.mxu0 0.0
        %570 = vmatprep.subr.mxu0 0.0
        %571 = vmatpush1.msra.mxu0 0.0
        %572 = vmatprep.subr.mxu0 0.0
        %573 = vmatpush1.msra.mxu0 0.0
        %574 = vmatprep.subr.mxu0 0.0
        %575 = vmatpush1.msra.mxu0 0.0
        %576 = vmatprep.mubr.f32.mxu0 0.0
        %577 = vmatmul.mubr.f32.gmra.mrb[0].mxu0 %v230
        %v578 = vpop.f32.mrb[0].mxu0
        %v579 = vadd.f32 %v216, %v578
        %v580 = vpop.f32.mrb[0].mxu0
        %v581 = vadd.f32 %v216, %v580
        %582 = vmatprep.mubr.f32.mxu0 0.0
        %583 = vmatmul.mubr.f32.gmra.mrb[0].mxu0 %v233
        %v584 = vpop.f32.mrb[0].mxu0
        %v585 = vadd.f32 %v221, %v584
        %v586 = vpop.f32.mrb[0].mxu0
        %v587 = vadd.f32 %v221, %v586
        %588 = vmatprep.mubr.f32.mxu0 0.0
        %589 = vmatmul.mubr.f32.gmra.mrb[0].mxu0 %v236
        %v590 = vpop.f32.mrb[0].mxu0
        %v591 = vadd.f32 %v226, %v590
        %v592 = vpop.f32.mrb[0].mxu0
        %v593 = vadd.f32 %v226, %v592
        %594 = vdwg.mxu0
        %595 = vst [vmem:[%s188] sm:$0xff] %v330
        %596 = vst [vmem:[%s188 + $0x8] sm:$0xff] %v332
        %597 = vst [vmem:[%s188 + $0x10] sm:$0xff] %v413
        %598 = vst [vmem:[%s188 + $0x18] sm:$0xff] %v415
        %599 = vst [vmem:[%s188 + $0x20] sm:$0xff] %v496
        %600 = vst [vmem:[%s188 + $0x28] sm:$0xff] %v498
        %601 = vst [vmem:[%s188 + $0x30] sm:$0xff] %v579
        %602 = vst [vmem:[%s188 + $0x38] sm:$0xff] %v581
        %603 = vst [vmem:[%s188 + $0x40] sm:$0xff] %v336
        %604 = vst [vmem:[%s188 + $0x48] sm:$0xff] %v338
        %605 = vst [vmem:[%s188 + $0x50] sm:$0xff] %v419
        %606 = vst [vmem:[%s188 + $0x58] sm:$0xff] %v421
        %607 = vst [vmem:[%s188 + $0x60] sm:$0xff] %v502
        %608 = vst [vmem:[%s188 + $0x68] sm:$0xff] %v504
        %609 = vst [vmem:[%s188 + $0x70] sm:$0xff] %v585
        %610 = vst [vmem:[%s188 + $0x78] sm:$0xff] %v587
        %611 = vst [vmem:[%s188 + $0x80] sm:$0xf] %v342
        %612 = vst [vmem:[%s188 + $0x88] sm:$0xf] %v344
        %613 = vst [vmem:[%s188 + $0x90] sm:$0xf] %v425
        %614 = vst [vmem:[%s188 + $0x98] sm:$0xf] %v427
        %615 = vst [vmem:[%s188 + $0xa0] sm:$0xf] %v508
        %616 = vst [vmem:[%s188 + $0xa8] sm:$0xf] %v510
        %617 = vst [vmem:[%s188 + $0xb0] sm:$0xf] %v591
        %618 = vst [vmem:[%s188 + $0xb8] sm:$0xf] %v593
        %s619 = sand.u32 %s96, 1
        %s620 = scalar_lea.sflag [#allocation4], %s619
        %s621 = sand.u32 %s96, 1
        %s622 = smul.addr %s621, 192
        %s623 = scalar_lea.vmem [#allocation5], %s622
        // Predicated region
        $region37: #{tpu_custom_call.1} parent=31 // pred_check
          %p624 = pneg %p106
        $region38: #{tpu_custom_call.1} parent=31 // pred_check_branch
          %626 = sbr.rel (%p624) target = $region40
        $region39: #{tpu_custom_call.1} parent=31 // pred_region
          %s627 = smul.u32 8, %s20
          %s629 = ssub.s32 3072, 3072
          %630 = vsyncadd %s620, %s629
          %s631 = smul.addr %s627, 128
          %s632 = scalar_lea.hbm %s3, %s631
          %s633 = sshll.u32 %s623, 4
          %s634 = int_to_ptr.vmem [resolvable:$true] %s633
          %639 = dma.vmem_to_hbm [thread:$0]  %s634, 3072, %s632, %s620, 1024, 2048, 64
        $region40: #{tpu_custom_call.1} parent=31 // pred_fallthru
          _
      $region32: #{tpu_custom_call.1} parent=5 // pred_fallthru
        _
      %p640 = scmp.le.s32.totalorder 2, %s15
      // Predicated region
      $region41: #{tpu_custom_call.1} parent=5 // pred_check
        %p641 = pneg %p640
      $region42: #{tpu_custom_call.1} parent=5 // pred_check_branch
        %643 = sbr.rel (%p641) target = $region44
      $region43: #{tpu_custom_call.1} parent=5 // pred_region
        %s644 = ssub.s32 %s15, 2
        // Predicated region
        $region45: #{tpu_custom_call.1} parent=43 // pred_check
          %p645 = pneg %p112
        $region46: #{tpu_custom_call.1} parent=43 // pred_check_branch
          %647 = sbr.rel (%p645) target = $region48
        $region47: #{tpu_custom_call.1} parent=43 // pred_region
          %s648 = sand.u32 %s97, 1
          %s649 = scalar_lea.sflag [#allocation4], %s648
          %s650 = sand.u32 %s97, 1
          %s651 = smul.addr %s650, 192
          %s652 = scalar_lea.vmem [#allocation5], %s651
          %653 = dma.done %s649, 3072
        $region48: #{tpu_custom_call.1} parent=43 // pred_fallthru
          _
      $region44: #{tpu_custom_call.1} parent=5 // pred_fallthru
        _
    $region6: #{tpu_custom_call.1} parent=1 // loop_footer
      %s19 = sadd.s32 1, %s15
    $region7: #{tpu_custom_call.1} parent=1 // loop_footer_branch
      %14 = sbr.rel target = $region3
    $region8: #{tpu_custom_call.1} parent=1 // loop_exit
      _
    %654 = vsyncpa [#allocation3], 1
    %s655 = scalar_lea.sflag [#allocation3], 1
    %656 = vsyncpa %s655, 1
    %657 = vsyncpa [#allocation4], 1
    %s658 = scalar_lea.sflag [#allocation4], 1
    %659 = vsyncpa %s658, 1

</llo_original>
